<compile_context>
chip_gen: v7x
topology: tpu7x:2x2x1
jax: 0.10.0
libtpu: 0.0.40
codegen_flags: <defaults>
</compile_context>

<pallas_src>
import jax
import jax.numpy as jnp
from jax.experimental import pallas as pl
from jax.experimental.pallas import tpu as pltpu

IN_DIM = 14
HIDDEN_DIM = 64
OUT_DIM = 3


def mlp_kernel(x_ref, w1_ref, b1_ref, w2_ref, b2_ref, o_ref):
    # First matmul on the MXU: cast x / W1 to bf16 in-kernel, accumulate in f32.
    h = jnp.dot(
        x_ref[...].astype(jnp.bfloat16),
        w1_ref[...].astype(jnp.bfloat16),
        preferred_element_type=jnp.float32,
    )
    # Bias + ReLU in f32 (v5e VPU has no bf16 path).
    h = jnp.maximum(h + b1_ref[...], 0.0)
    # Second (tiny, 64x3) matmul and bias, f32 throughout.
    y = jnp.dot(h, w2_ref[...], preferred_element_type=jnp.float32)
    o_ref[...] = y + b2_ref[...]


def _round_up(n, m):
    return ((n + m - 1) // m) * m


def mlp_forward(x, w1, b1, w2, b2, tb=8192):
    """x: (B, 14) f32.  w1: (14, 64), b1: (1, 64), w2: (64, 3), b2: (1, 3).

    Returns (B, 3) float32.
    """
    B = x.shape[0]
    # Tile size: multiple of 8; capped at round_up(ceil(B/2), 8) so that we get
    # at least two grid steps whenever the batch allows it (v7x megacore).
    tb = int(min(tb, max(8, _round_up(pl.cdiv(B, 2), 8))))
    n_blocks = pl.cdiv(B, tb)

    cost = pl.CostEstimate(
        flops=2 * B * (IN_DIM * HIDDEN_DIM + HIDDEN_DIM * OUT_DIM),
        transcendentals=0,
        bytes_accessed=(
            B * IN_DIM * 4            # x (f32, read)
            + B * OUT_DIM * 4         # output (f32, write)
            + IN_DIM * HIDDEN_DIM * 4 # W1
            + HIDDEN_DIM * 4          # b1
            + HIDDEN_DIM * OUT_DIM * 4  # W2
            + OUT_DIM * 4             # b2
        ),
    )

    out = pl.pallas_call(
        mlp_kernel,
        out_shape=jax.ShapeDtypeStruct((B, OUT_DIM), jnp.float32),
        grid=(n_blocks,),
        in_specs=[
            pl.BlockSpec((tb, IN_DIM), lambda i: (i, 0)),             # x tile
            pl.BlockSpec((IN_DIM, HIDDEN_DIM), lambda i: (0, 0)),     # W1 (resident)
            pl.BlockSpec((1, HIDDEN_DIM), lambda i: (0, 0)),          # b1 (resident)
            pl.BlockSpec((HIDDEN_DIM, OUT_DIM), lambda i: (0, 0)),    # W2 (resident)
            pl.BlockSpec((1, OUT_DIM), lambda i: (0, 0)),             # b2 (resident)
        ],
        out_specs=pl.BlockSpec((tb, OUT_DIM), lambda i: (i, 0)),      # (tb, 3) block
        compiler_params=pltpu.CompilerParams(
            dimension_semantics=("parallel",)),
        cost_estimate=cost,
    )(x, w1, b1, w2, b2)

    return out


def init_params(key):
    """Deterministic init matching nn.Linear shapes (stored transposed)."""
    k1, k2, k3, k4 = jax.random.split(key, 4)
    # PyTorch default: U(-1/sqrt(fan_in), 1/sqrt(fan_in))
    lim1 = 1.0 / jnp.sqrt(jnp.float32(IN_DIM))
    lim2 = 1.0 / jnp.sqrt(jnp.float32(HIDDEN_DIM))
    w1 = jax.random.uniform(k1, (IN_DIM, HIDDEN_DIM), jnp.float32, -lim1, lim1)
    b1 = jax.random.uniform(k2, (1, HIDDEN_DIM), jnp.float32, -lim1, lim1)
    w2 = jax.random.uniform(k3, (HIDDEN_DIM, OUT_DIM), jnp.float32, -lim2, lim2)
    b2 = jax.random.uniform(k4, (1, OUT_DIM), jnp.float32, -lim2, lim2)
    return w1, b1, w2, b2


def _reference(x, w1, b1, w2, b2):
    # Reference with the same bf16 rounding of x / W1 that the kernel applies
    # (MXU products of bf16 inputs are exact in f32, accumulation is f32).
    x32 = x.astype(jnp.bfloat16).astype(jnp.float32)
    w132 = w1.astype(jnp.bfloat16).astype(jnp.float32)
    return jnp.maximum(x32 @ w132 + b1, 0.0) @ w2 + b2


if __name__ == "__main__":
    key = jax.random.PRNGKey(0)
    kx, kx2, kp = jax.random.split(key, 3)

    w1, b1, w2, b2 = init_params(kp)

    # Small-shape check (single grid step, tile clamped to the batch).
    batch = 8
    x = jax.random.normal(kx, (batch, IN_DIM), jnp.float32)
    out = jax.block_until_ready(mlp_forward(x, w1, b1, w2, b2))
    ref = _reference(x, w1, b1, w2, b2)
    assert out.shape == (batch, OUT_DIM)
    assert jnp.allclose(out, ref, atol=1e-4, rtol=1e-4)

    # Ragged batch exercising grid > 1 and the Pallas-handled partial last block.
    batch2 = 1037
    x2 = jax.random.normal(kx2, (batch2, IN_DIM), jnp.float32)
    out2 = jax.block_until_ready(mlp_forward(x2, w1, b1, w2, b2))
    ref2 = _reference(x2, w1, b1, w2, b2)
    assert out2.shape == (batch2, OUT_DIM)
    assert jnp.allclose(out2, ref2, atol=1e-4, rtol=1e-4)

    print("KERNEL_OK")
</pallas_src>

<mosaic_0001>
module attributes {stable_mosaic.version = 11 : i64} {
  func.func @mlp_kernel(%arg0: i32, %arg1: memref<8x14xf32, #tpu.memory_space<vmem>>, %arg2: memref<14x64xf32, #tpu.memory_space<vmem>>, %arg3: memref<1x64xf32, #tpu.memory_space<vmem>>, %arg4: memref<64x3xf32, #tpu.memory_space<vmem>>, %arg5: memref<1x3xf32, #tpu.memory_space<vmem>>, %arg6: memref<8x3xf32, #tpu.memory_space<vmem>>) attributes {dimension_semantics = [#tpu.dimension_semantics<parallel>], iteration_bounds = array<i64: 1>, scalar_prefetch = 0 : i64, scratch_operands = 0 : i64, tpu.core_type = #tpu.core_type<tc>, window_params = [{transform_indices = @transform_0, window_bounds = array<i64: 8, 14>}, {pipeline_mode = #tpu.pipeline_mode<synchronous>, transform_indices = @transform_1, window_bounds = array<i64: 14, 64>}, {pipeline_mode = #tpu.pipeline_mode<synchronous>, transform_indices = @transform_2, window_bounds = array<i64: 1, 64>}, {pipeline_mode = #tpu.pipeline_mode<synchronous>, transform_indices = @transform_3, window_bounds = array<i64: 64, 3>}, {pipeline_mode = #tpu.pipeline_mode<synchronous>, transform_indices = @transform_4, window_bounds = array<i64: 1, 3>}, {transform_indices = @transform_5, window_bounds = array<i64: 8, 3>}]} {
    %c0 = arith.constant 0 : index
    %c0_0 = arith.constant 0 : index
    %0 = vector.load %arg1[%c0, %c0_0] : memref<8x14xf32, #tpu.memory_space<vmem>>, vector<8x14xf32>
    %1 = arith.truncf %0 : vector<8x14xf32> to vector<8x14xbf16>
    %c0_1 = arith.constant 0 : index
    %c0_2 = arith.constant 0 : index
    %2 = vector.load %arg2[%c0_1, %c0_2] : memref<14x64xf32, #tpu.memory_space<vmem>>, vector<14x64xf32>
    %3 = arith.truncf %2 : vector<14x64xf32> to vector<14x64xbf16>
    %cst = arith.constant dense<0.000000e+00> : vector<8x64xf32>
    %4 = tpu.matmul %1, %3, %cst {dimension_numbers = #tpu.dot_dimension_numbers<[1], [0], [0], [1], [0, 0, 1, 1], [], []>} : vector<8x14xbf16>, vector<14x64xbf16>, vector<8x64xf32> -> vector<8x64xf32>
    %c0_3 = arith.constant 0 : index
    %c0_4 = arith.constant 0 : index
    %5 = vector.load %arg3[%c0_3, %c0_4] : memref<1x64xf32, #tpu.memory_space<vmem>>, vector<1x64xf32>
    %6 = vector.broadcast %5 : vector<1x64xf32> to vector<8x64xf32>
    %7 = arith.addf %4, %6 : vector<8x64xf32>
    %cst_5 = arith.constant 0.000000e+00 : f32
    %8 = vector.broadcast %cst_5 : f32 to vector<8x64xf32>
    %9 = arith.maximumf %7, %8 : vector<8x64xf32>
    %c0_6 = arith.constant 0 : index
    %c0_7 = arith.constant 0 : index
    %10 = vector.load %arg4[%c0_6, %c0_7] : memref<64x3xf32, #tpu.memory_space<vmem>>, vector<64x3xf32>
    %cst_8 = arith.constant dense<0.000000e+00> : vector<8x3xf32>
    %11 = tpu.matmul %9, %10, %cst_8 {dimension_numbers = #tpu.dot_dimension_numbers<[1], [0], [0], [1], [0, 0, 1, 1], [], []>} : vector<8x64xf32>, vector<64x3xf32>, vector<8x3xf32> -> vector<8x3xf32>
    %c0_9 = arith.constant 0 : index
    %c0_10 = arith.constant 0 : index
    %12 = vector.load %arg5[%c0_9, %c0_10] : memref<1x3xf32, #tpu.memory_space<vmem>>, vector<1x3xf32>
    %13 = vector.broadcast %12 : vector<1x3xf32> to vector<8x3xf32>
    %14 = arith.addf %11, %13 : vector<8x3xf32>
    %c0_11 = arith.constant 0 : index
    %c0_12 = arith.constant 0 : index
    %15 = vector.load %arg6[%c0_11, %c0_12] : memref<8x3xf32, #tpu.memory_space<vmem>>, vector<8x3xf32>
    tpu.vector_store %arg6[%c0_11, %c0_12], %14 {strides = array<i32>} : memref<8x3xf32, #tpu.memory_space<vmem>>, vector<8x3xf32>,
    return
  }
  func.func @transform_0(%arg0: i32) -> (i32, i32) {
    %c0_i32 = arith.constant 0 : i32
    %c0_i32_0 = arith.constant 0 : i32
    return %arg0, %c0_i32 : i32, i32
  }
  func.func @transform_1(%arg0: i32) -> (i32, i32) {
    %c0_i32 = arith.constant 0 : i32
    %c0_i32_0 = arith.constant 0 : i32
    %c0_i32_1 = arith.constant 0 : i32
    return %c0_i32, %c0_i32_0 : i32, i32
  }
  func.func @transform_2(%arg0: i32) -> (i32, i32) {
    %c0_i32 = arith.constant 0 : i32
    %c0_i32_0 = arith.constant 0 : i32
    %c0_i32_1 = arith.constant 0 : i32
    return %c0_i32, %c0_i32_0 : i32, i32
  }
  func.func @transform_3(%arg0: i32) -> (i32, i32) {
    %c0_i32 = arith.constant 0 : i32
    %c0_i32_0 = arith.constant 0 : i32
    %c0_i32_1 = arith.constant 0 : i32
    return %c0_i32, %c0_i32_0 : i32, i32
  }
  func.func @transform_4(%arg0: i32) -> (i32, i32) {
    %c0_i32 = arith.constant 0 : i32
    %c0_i32_0 = arith.constant 0 : i32
    %c0_i32_1 = arith.constant 0 : i32
    return %c0_i32, %c0_i32_0 : i32, i32
  }
  func.func @transform_5(%arg0: i32) -> (i32, i32) {
    %c0_i32 = arith.constant 0 : i32
    %c0_i32_0 = arith.constant 0 : i32
    return %arg0, %c0_i32 : i32, i32
  }
}

</mosaic_0001>

<llo_original>
// kernel: tpu_custom_call.1
$region0: #{tpu_custom_call.1}
  #allocation0 [shape = 'u32[]', space=smem, size = 0x4, offset = 0x4, fixed_abs, tag = 'smem constant byte address 0x4 - core index']
  #allocation1 [shape = 'u32[144,128]{1,0:T(1,128)}', space=vmem, size = 0x12000, scoped, tag = 'internal scratch']
  %s0 = inlined_call_operand.vmem [shape: f32[8,14], index: 0, kind: input, shape index: {}]
  %s1 = inlined_call_operand.vmem [shape: f32[14,64], index: 1, kind: input, shape index: {}]
  %s2 = inlined_call_operand.vmem [shape: f32[1,64], index: 2, kind: input, shape index: {}]
  %s3 = inlined_call_operand.vmem [shape: f32[64,3], index: 3, kind: input, shape index: {}]
  %s4 = inlined_call_operand.vmem [shape: f32[1,3], index: 4, kind: input, shape index: {}]
  %s5 = inlined_call_operand.vmem [shape: f32[8,3], index: 5, kind: output, shape index: {}]
  %s6 = sld [smem:[#allocation0]]
  $region30: #{tpu_custom_call.1} parent=0
    _
  %s8 = ssub.s32 1, %s6
  %s9 = scalar_select 0, %s8, %s6
  // Predicated region
  $region2: #{tpu_custom_call.1} parent=0 // pred_check
    _
  $region3: #{tpu_custom_call.1} parent=0 // pred_check_branch
    %11 = sbr.rel (0) target = $region5
  $region4: #{tpu_custom_call.1} parent=0 // pred_region
    _
  $region5: #{tpu_custom_call.1} parent=0 // pred_fallthru
    _
  // Predicated region
  $region6: #{tpu_custom_call.1} parent=0 // pred_check
    _
  $region7: #{tpu_custom_call.1} parent=0 // pred_check_branch
    %13 = sbr.rel (0) target = $region9
  $region8: #{tpu_custom_call.1} parent=0 // pred_region
    _
  $region9: #{tpu_custom_call.1} parent=0 // pred_fallthru
    _
  // Predicated region
  $region10: #{tpu_custom_call.1} parent=0 // pred_check
    _
  $region11: #{tpu_custom_call.1} parent=0 // pred_check_branch
    %15 = sbr.rel (0) target = $region13
  $region12: #{tpu_custom_call.1} parent=0 // pred_region
    _
  $region13: #{tpu_custom_call.1} parent=0 // pred_fallthru
    _
  // Predicated region
  $region14: #{tpu_custom_call.1} parent=0 // pred_check
    _
  $region15: #{tpu_custom_call.1} parent=0 // pred_check_branch
    %17 = sbr.rel (0) target = $region17
  $region16: #{tpu_custom_call.1} parent=0 // pred_region
    _
  $region17: #{tpu_custom_call.1} parent=0 // pred_fallthru
    _
  // Predicated region
  $region18: #{tpu_custom_call.1} parent=0 // pred_check
    _
  $region19: #{tpu_custom_call.1} parent=0 // pred_check_branch
    %19 = sbr.rel (0) target = $region21
  $region20: #{tpu_custom_call.1} parent=0 // pred_region
    _
  $region21: #{tpu_custom_call.1} parent=0 // pred_fallthru
    _
  %v21 = vld [vmem:[%s0] sm:$0xff]
  %v22 = vpack.c.bf16 %v21, %v21
  %v23 = vld [vmem:[%s1] sm:$0xff]
  %v24 = vld [vmem:[%s1 + $0x8] sm:$0x3f]
  %v25 = vpack.c.bf16 %v24, %v23
  %v26 = vld [vmem:[%s2] sm:$0x1]
  %v28 = vlaneseq
  %v29 = vshrl.u32 %v28, 7
  %v30 = vsub.s32 0, %v29
  %v31 = vrot.slane %v26, %v30
  %vm33 = vcmask 113664
  %v35 = vsel %vm33, %v22, 0
  %vm37 = vcmask 1046528
  %v39 = vsel %vm37, %v25, 0
  %41 = vmatprep.subr.bf16.mxu0 0
  %42 = vmatpush1.bf16.msra.mxu0 %v39
  %43 = vmatprep.subr.bf16.mxu0 0
  %44 = vmatpush1.bf16.msra.mxu0 0
  %45 = vmatprep.subr.bf16.mxu0 0
  %46 = vmatpush1.bf16.msra.mxu0 0
  %47 = vmatprep.subr.bf16.mxu0 0
  %48 = vmatpush1.bf16.msra.mxu0 0
  %49 = vmatprep.subr.bf16.mxu0 0
  %50 = vmatpush1.bf16.msra.mxu0 0
  %51 = vmatprep.subr.bf16.mxu0 0
  %52 = vmatpush1.bf16.msra.mxu0 0
  %53 = vmatprep.subr.bf16.mxu0 0
  %54 = vmatpush1.bf16.msra.mxu0 0
  %55 = vmatprep.subr.bf16.mxu0 0
  %56 = vmatpush1.bf16.msra.mxu0 0
  %57 = vmatprep.subr.bf16.mxu0 0
  %58 = vmatpush1.bf16.msra.mxu0 0
  %59 = vmatprep.subr.bf16.mxu0 0
  %60 = vmatpush1.bf16.msra.mxu0 0
  %61 = vmatprep.subr.bf16.mxu0 0
  %62 = vmatpush1.bf16.msra.mxu0 0
  %63 = vmatprep.subr.bf16.mxu0 0
  %64 = vmatpush1.bf16.msra.mxu0 0
  %65 = vmatprep.subr.bf16.mxu0 0
  %66 = vmatpush1.bf16.msra.mxu0 0
  %67 = vmatprep.subr.bf16.mxu0 0
  %68 = vmatpush1.bf16.msra.mxu0 0
  %69 = vmatprep.subr.bf16.mxu0 0
  %70 = vmatpush1.bf16.msra.mxu0 0
  %71 = vmatprep.subr.bf16.mxu0 0
  %72 = vmatpush1.bf16.msra.mxu0 0
  %73 = vmatprep.mubr.bf16.mxu0 0
  %74 = vmatmul.mubr.bf16.gmra.mrb[0].mxu0 %v35
  %v75 = vpop.f32.mrb[0].mxu0
  %v76 = vadd.f32 %v31, %v75
  %v77 = vpop.f32.mrb[0].mxu0
  %v78 = vpop.f32.mrb[0].mxu0
  %v79 = vpop.f32.mrb[0].mxu0
  %80 = vdwg.mxu0
  %v81 = vmax.f32 %v76, 0.0
  %v82 = vld [vmem:[%s3] sm:$0xff]
  %v83 = vld [vmem:[%s3 + $0x8] sm:$0xff]
  %v84 = vld [vmem:[%s3 + $0x10] sm:$0xff]
  %v85 = vld [vmem:[%s3 + $0x18] sm:$0xff]
  %v86 = vld [vmem:[%s3 + $0x20] sm:$0xff]
  %v87 = vld [vmem:[%s3 + $0x28] sm:$0xff]
  %v88 = vld [vmem:[%s3 + $0x30] sm:$0xff]
  %v89 = vld [vmem:[%s3 + $0x38] sm:$0xff]
  %v90 = vld [vmem:[%s4] sm:$0x1]
  %v92 = vlaneseq
  %v93 = vshrl.u32 %v92, 7
  %v94 = vsub.s32 0, %v93
  %v95 = vrot.slane %v90, %v94
  %vm97 = vcmask 523264
  %v99 = vsel %vm97, %v81, 0
  %101 = vmatprep.subr.mxu0 0.0
  %102 = vmatpush1.msra.mxu0 %v82
  %103 = vmatprep.subr.mxu0 0.0
  %104 = vmatpush1.msra.mxu0 %v83
  %105 = vmatprep.subr.mxu0 0.0
  %106 = vmatpush1.msra.mxu0 %v84
  %107 = vmatprep.subr.mxu0 0.0
  %108 = vmatpush1.msra.mxu0 %v85
  %109 = vmatprep.subr.mxu0 0.0
  %110 = vmatpush1.msra.mxu0 %v86
  %111 = vmatprep.subr.mxu0 0.0
  %112 = vmatpush1.msra.mxu0 %v87
  %113 = vmatprep.subr.mxu0 0.0
  %114 = vmatpush1.msra.mxu0 %v88
  %115 = vmatprep.subr.mxu0 0.0
  %116 = vmatpush1.msra.mxu0 %v89
  %117 = vmatprep.subr.mxu0 0.0
  %118 = vmatpush1.msra.mxu0 0.0
  %119 = vmatprep.subr.mxu0 0.0
  %120 = vmatpush1.msra.mxu0 0.0
  %121 = vmatprep.subr.mxu0 0.0
  %122 = vmatpush1.msra.mxu0 0.0
  %123 = vmatprep.subr.mxu0 0.0
  %124 = vmatpush1.msra.mxu0 0.0
  %125 = vmatprep.subr.mxu0 0.0
  %126 = vmatpush1.msra.mxu0 0.0
  %127 = vmatprep.subr.mxu0 0.0
  %128 = vmatpush1.msra.mxu0 0.0
  %129 = vmatprep.subr.mxu0 0.0
  %130 = vmatpush1.msra.mxu0 0.0
  %131 = vmatprep.subr.mxu0 0.0
  %132 = vmatpush1.msra.mxu0 0.0
  %133 = vmatprep.subr.mxu0 0.0
  %134 = vmatpush1.msra.mxu0 0.0
  %135 = vmatprep.subr.mxu0 0.0
  %136 = vmatpush1.msra.mxu0 0.0
  %137 = vmatprep.subr.mxu0 0.0
  %138 = vmatpush1.msra.mxu0 0.0
  %139 = vmatprep.subr.mxu0 0.0
  %140 = vmatpush1.msra.mxu0 0.0
  %141 = vmatprep.subr.mxu0 0.0
  %142 = vmatpush1.msra.mxu0 0.0
  %143 = vmatprep.subr.mxu0 0.0
  %144 = vmatpush1.msra.mxu0 0.0
  %145 = vmatprep.subr.mxu0 0.0
  %146 = vmatpush1.msra.mxu0 0.0
  %147 = vmatprep.subr.mxu0 0.0
  %148 = vmatpush1.msra.mxu0 0.0
  %149 = vmatprep.subr.mxu0 0.0
  %150 = vmatpush1.msra.mxu0 0.0
  %151 = vmatprep.subr.mxu0 0.0
  %152 = vmatpush1.msra.mxu0 0.0
  %153 = vmatprep.subr.mxu0 0.0
  %154 = vmatpush1.msra.mxu0 0.0
  %155 = vmatprep.subr.mxu0 0.0
  %156 = vmatpush1.msra.mxu0 0.0
  %157 = vmatprep.subr.mxu0 0.0
  %158 = vmatpush1.msra.mxu0 0.0
  %159 = vmatprep.subr.mxu0 0.0
  %160 = vmatpush1.msra.mxu0 0.0
  %161 = vmatprep.subr.mxu0 0.0
  %162 = vmatpush1.msra.mxu0 0.0
  %163 = vmatprep.subr.mxu0 0.0
  %164 = vmatpush1.msra.mxu0 0.0
  %165 = vmatprep.mubr.f32.mxu0 0.0
  %166 = vmatmul.mubr.f32.gmra.mrb[0].mxu0 %v99
  %v167 = vpop.f32.mrb[0].mxu0
  %v168 = vadd.f32 %v95, %v167
  %v169 = vpop.f32.mrb[0].mxu0
  %170 = vdwg.mxu0
  %vm171 = vcmask 23552
  %172 = vst.msk [vmem:[%s5] sm:$0xff] %vm171, %v168
  // Predicated region
  $region22: #{tpu_custom_call.1} parent=0 // pred_check
    _
  $region23: #{tpu_custom_call.1} parent=0 // pred_check_branch
    %174 = sbr.rel (0) target = $region25
  $region24: #{tpu_custom_call.1} parent=0 // pred_region
    _
  $region25: #{tpu_custom_call.1} parent=0 // pred_fallthru
    _
  // Predicated region
  $region26: #{tpu_custom_call.1} parent=0 // pred_check
    _
  $region27: #{tpu_custom_call.1} parent=0 // pred_check_branch
    %176 = sbr.rel (0) target = $region29
  $region28: #{tpu_custom_call.1} parent=0 // pred_region
    _
  $region29: #{tpu_custom_call.1} parent=0 // pred_fallthru
    _

</llo_original>
